<compile_context>
chip_gen: v6e
topology: v6e:2x2x1
jax: 0.10.0
libtpu: 0.0.40
codegen_flags: <defaults>
</compile_context>

<pallas_src>
import jax
import jax.numpy as jnp
from jax.experimental import pallas as pl
from jax.experimental.pallas import tpu as pltpu


def _round_up(x, m):
    return (x + m - 1) // m * m


def _critic_kernel(s_ref, a_ref, w1s_ref, w1a_ref, b1_ref,
                   w2_ref, b2_ref, w3_ref, b3_ref, q_ref):
    # ---- Layer 1 (+ fused concat): h1 = relu(state @ W1s + action @ W1a + b1)
    s = s_ref[...].astype(jnp.bfloat16)
    a = a_ref[...].astype(jnp.bfloat16)
    h1 = jnp.dot(s, w1s_ref[...], preferred_element_type=jnp.float32)
    h1 = h1 + jnp.dot(a, w1a_ref[...], preferred_element_type=jnp.float32)
    h1 = jnp.maximum(h1 + b1_ref[...], 0.0)            # f32 VPU work

    # ---- Layer 2: h2 = relu(h1 @ W2 + b2)
    h2 = jnp.dot(h1.astype(jnp.bfloat16), w2_ref[...],
                 preferred_element_type=jnp.float32)
    h2 = jnp.maximum(h2 + b2_ref[...], 0.0)

    # ---- q head (out_features = 1): VPU multiply + lane reduce, not a
    #      1-column MXU pass.  w3 is stored as a (1, L2P) row.
    w3_row = w3_ref[...].astype(jnp.float32)
    q = jnp.sum(h2 * w3_row, axis=-1, keepdims=True)
    q_ref[...] = (q + b3_ref[...]).astype(q_ref.dtype)


@jax.jit
def critic_forward(state, action, params):
    """state: (B, obs), action: (B, act) -> q: (B, 1)."""
    w1s, w1a, b1, w2, b2, w3, b3 = params
    B, obs_dim = state.shape
    act_dim = action.shape[1]
    l1p = w1s.shape[1]
    l2p = w2.shape[1]

    # Batch tiling: whole batch as one block when small, else 256-row tiles.
    B_BLOCK_MAX = 256
    if B <= B_BLOCK_MAX:
        b_blk, b_pad = B, B
    else:
        b_blk = B_BLOCK_MAX
        b_pad = _round_up(B, b_blk)
    if b_pad != B:
        pad = ((0, b_pad - B), (0, 0))
        state = jnp.pad(state, pad)
        action = jnp.pad(action, pad)

    grid = (b_pad // b_blk,)
    batch_map = lambda i: (i, 0)   # activations walk over batch tiles
    const_map = lambda i: (0, 0)   # weights/biases stay VMEM-resident

    q = pl.pallas_call(
        _critic_kernel,
        out_shape=jax.ShapeDtypeStruct((b_pad, 1), jnp.float32),
        grid=grid,
        in_specs=[
            pl.BlockSpec((b_blk, obs_dim), batch_map),   # state
            pl.BlockSpec((b_blk, act_dim), batch_map),   # action
            pl.BlockSpec((obs_dim, l1p), const_map),     # W1_state (bf16)
            pl.BlockSpec((act_dim, l1p), const_map),     # W1_action (bf16)
            pl.BlockSpec((1, l1p), const_map),           # b1 (f32)
            pl.BlockSpec((l1p, l2p), const_map),         # W2 (bf16)
            pl.BlockSpec((1, l2p), const_map),           # b2 (f32)
            pl.BlockSpec((1, l2p), const_map),           # W3 row (bf16)
            pl.BlockSpec((1, 1), const_map),             # b3 (f32)
        ],
        out_specs=pl.BlockSpec((b_blk, 1), batch_map),
        compiler_params=pltpu.CompilerParams(
            dimension_semantics=("parallel",)),
    )(state, action, w1s, w1a, b1, w2, b2, w3, b3)
    return q[:B]


def init_params(key, obs_dim, act_dim, l1_dim, l2_dim):
    """PyTorch nn.Linear default init: U(-1/sqrt(fan_in), 1/sqrt(fan_in)).

    Weights are stored (in, out) -- i.e. the transpose of torch's (out, in) --
    then W1 is split into state/action halves, all feature dims are zero-padded
    to multiples of 128, and weights are cast to bf16 (biases stay f32)."""
    l1p = _round_up(l1_dim, 128)   # 400 -> 512
    l2p = _round_up(l2_dim, 128)   # 300 -> 384

    def linear(k, fan_in, fan_out):
        kw, kb = jax.random.split(k)
        bound = 1.0 / float(fan_in) ** 0.5
        w = jax.random.uniform(kw, (fan_in, fan_out), jnp.float32,
                               minval=-bound, maxval=bound)
        b = jax.random.uniform(kb, (1, fan_out), jnp.float32,
                               minval=-bound, maxval=bound)
        return w, b

    k1, k2, k3 = jax.random.split(key, 3)
    w1, b1 = linear(k1, obs_dim + act_dim, l1_dim)   # (35, 400)
    w2, b2 = linear(k2, l1_dim, l2_dim)              # (400, 300)
    w3, b3 = linear(k3, l2_dim, 1)                   # (300, 1)

    # Split W1 rows so cat([state, action]) folds into two dots.
    w1s, w1a = w1[:obs_dim], w1[obs_dim:]

    def pad_cols(x, n):
        return jnp.pad(x, ((0, 0), (0, n - x.shape[1])))

    def pad_rows(x, n):
        return jnp.pad(x, ((0, n - x.shape[0]), (0, 0)))

    # Zero padding keeps results identical: padded h1/h2 columns are
    # relu(0 + 0) = 0 and padded w3 entries contribute 0 to the reduction.
    w1s = pad_cols(w1s, l1p).astype(jnp.bfloat16)
    w1a = pad_cols(w1a, l1p).astype(jnp.bfloat16)
    b1 = pad_cols(b1, l1p)
    w2 = pad_cols(pad_rows(w2, l1p), l2p).astype(jnp.bfloat16)
    b2 = pad_cols(b2, l2p)
    w3_row = pad_cols(w3.T, l2p).astype(jnp.bfloat16)   # (1, l2p)
    return (w1s, w1a, b1, w2, b2, w3_row, b3)


def critic_forward_ref(state, action, params):
    """Pure-JAX reference with the same bf16-weight / f32-accumulate numerics."""
    w1s, w1a, b1, w2, b2, w3, b3 = params
    f32 = jnp.float32
    h1 = (jnp.dot(state.astype(jnp.bfloat16), w1s, preferred_element_type=f32)
          + jnp.dot(action.astype(jnp.bfloat16), w1a, preferred_element_type=f32))
    h1 = jnp.maximum(h1 + b1, 0.0)
    h2 = jnp.dot(h1.astype(jnp.bfloat16), w2, preferred_element_type=f32)
    h2 = jnp.maximum(h2 + b2, 0.0)
    return jnp.sum(h2 * w3.astype(f32), axis=-1, keepdims=True) + b3


if __name__ == "__main__":
    # Small shapes consistent with the module (Ant-v4: obs=27, act=8;
    # LAYER1=400, LAYER2=300 as in __init__).
    BATCH, OBS_DIM, ACT_DIM = 8, 27, 8
    LAYER1, LAYER2 = 400, 300

    key = jax.random.PRNGKey(0)
    k_params, k_state, k_action = jax.random.split(key, 3)

    params = init_params(k_params, OBS_DIM, ACT_DIM, LAYER1, LAYER2)
    state = jax.random.normal(k_state, (BATCH, OBS_DIM), jnp.float32)
    action = jax.random.normal(k_action, (BATCH, ACT_DIM), jnp.float32)

    q = critic_forward(state, action, params)
    jax.block_until_ready(q)

    q_ref = critic_forward_ref(state, action, params)
    assert q.shape == (BATCH, 1)
    assert jnp.allclose(q, q_ref, atol=5e-3, rtol=5e-3), "mismatch vs JAX ref"

    print("KERNEL_OK")
</pallas_src>

<mosaic_0001>
module attributes {stable_mosaic.version = 11 : i64} {
  func.func @_critic_kernel(%arg0: i32, %arg1: memref<8x27xf32, #tpu.memory_space<vmem>>, %arg2: memref<8x8xf32, #tpu.memory_space<vmem>>, %arg3: memref<27x512xbf16, #tpu.memory_space<vmem>>, %arg4: memref<8x512xbf16, #tpu.memory_space<vmem>>, %arg5: memref<1x512xf32, #tpu.memory_space<vmem>>, %arg6: memref<512x384xbf16, #tpu.memory_space<vmem>>, %arg7: memref<1x384xf32, #tpu.memory_space<vmem>>, %arg8: memref<1x384xbf16, #tpu.memory_space<vmem>>, %arg9: memref<1x1xf32, #tpu.memory_space<vmem>>, %arg10: memref<8x1xf32, #tpu.memory_space<vmem>>) attributes {dimension_semantics = [#tpu.dimension_semantics<parallel>], iteration_bounds = array<i64: 1>, scalar_prefetch = 0 : i64, scratch_operands = 0 : i64, tpu.core_type = #tpu.core_type<tc>, window_params = [{transform_indices = @transform_0, window_bounds = array<i64: 8, 27>}, {transform_indices = @transform_1, window_bounds = array<i64: 8, 8>}, {pipeline_mode = #tpu.pipeline_mode<synchronous>, transform_indices = @transform_2, window_bounds = array<i64: 27, 512>}, {pipeline_mode = #tpu.pipeline_mode<synchronous>, transform_indices = @transform_3, window_bounds = array<i64: 8, 512>}, {pipeline_mode = #tpu.pipeline_mode<synchronous>, transform_indices = @transform_4, window_bounds = array<i64: 1, 512>}, {pipeline_mode = #tpu.pipeline_mode<synchronous>, transform_indices = @transform_5, window_bounds = array<i64: 512, 384>}, {pipeline_mode = #tpu.pipeline_mode<synchronous>, transform_indices = @transform_6, window_bounds = array<i64: 1, 384>}, {pipeline_mode = #tpu.pipeline_mode<synchronous>, transform_indices = @transform_7, window_bounds = array<i64: 1, 384>}, {pipeline_mode = #tpu.pipeline_mode<synchronous>, transform_indices = @transform_8, window_bounds = array<i64: 1, 1>}, {transform_indices = @transform_9, window_bounds = array<i64: 8, 1>}]} {
    %c0 = arith.constant 0 : index
    %c0_0 = arith.constant 0 : index
    %0 = vector.load %arg1[%c0, %c0_0] : memref<8x27xf32, #tpu.memory_space<vmem>>, vector<8x27xf32>
    %1 = arith.truncf %0 : vector<8x27xf32> to vector<8x27xbf16>
    %c0_1 = arith.constant 0 : index
    %c0_2 = arith.constant 0 : index
    %2 = vector.load %arg2[%c0_1, %c0_2] : memref<8x8xf32, #tpu.memory_space<vmem>>, vector<8x8xf32>
    %3 = arith.truncf %2 : vector<8x8xf32> to vector<8x8xbf16>
    %c0_3 = arith.constant 0 : index
    %c0_4 = arith.constant 0 : index
    %4 = vector.load %arg3[%c0_3, %c0_4] : memref<27x512xbf16, #tpu.memory_space<vmem>>, vector<27x512xbf16>
    %cst = arith.constant dense<0.000000e+00> : vector<8x512xf32>
    %5 = tpu.matmul %1, %4, %cst {dimension_numbers = #tpu.dot_dimension_numbers<[1], [0], [0], [1], [0, 0, 1, 1], [], []>} : vector<8x27xbf16>, vector<27x512xbf16>, vector<8x512xf32> -> vector<8x512xf32>
    %c0_5 = arith.constant 0 : index
    %c0_6 = arith.constant 0 : index
    %6 = vector.load %arg4[%c0_5, %c0_6] : memref<8x512xbf16, #tpu.memory_space<vmem>>, vector<8x512xbf16>
    %cst_7 = arith.constant dense<0.000000e+00> : vector<8x512xf32>
    %7 = tpu.matmul %3, %6, %cst_7 {dimension_numbers = #tpu.dot_dimension_numbers<[1], [0], [0], [1], [0, 0, 1, 1], [], []>} : vector<8x8xbf16>, vector<8x512xbf16>, vector<8x512xf32> -> vector<8x512xf32>
    %8 = arith.addf %5, %7 : vector<8x512xf32>
    %c0_8 = arith.constant 0 : index
    %c0_9 = arith.constant 0 : index
    %9 = vector.load %arg5[%c0_8, %c0_9] : memref<1x512xf32, #tpu.memory_space<vmem>>, vector<1x512xf32>
    %10 = vector.broadcast %9 : vector<1x512xf32> to vector<8x512xf32>
    %11 = arith.addf %8, %10 : vector<8x512xf32>
    %cst_10 = arith.constant 0.000000e+00 : f32
    %12 = vector.broadcast %cst_10 : f32 to vector<8x512xf32>
    %13 = arith.maximumf %11, %12 : vector<8x512xf32>
    %14 = arith.truncf %13 : vector<8x512xf32> to vector<8x512xbf16>
    %c0_11 = arith.constant 0 : index
    %c0_12 = arith.constant 0 : index
    %15 = vector.load %arg6[%c0_11, %c0_12] : memref<512x384xbf16, #tpu.memory_space<vmem>>, vector<512x384xbf16>
    %cst_13 = arith.constant dense<0.000000e+00> : vector<8x384xf32>
    %16 = tpu.matmul %14, %15, %cst_13 {dimension_numbers = #tpu.dot_dimension_numbers<[1], [0], [0], [1], [0, 0, 1, 1], [], []>} : vector<8x512xbf16>, vector<512x384xbf16>, vector<8x384xf32> -> vector<8x384xf32>
    %c0_14 = arith.constant 0 : index
    %c0_15 = arith.constant 0 : index
    %17 = vector.load %arg7[%c0_14, %c0_15] : memref<1x384xf32, #tpu.memory_space<vmem>>, vector<1x384xf32>
    %18 = vector.broadcast %17 : vector<1x384xf32> to vector<8x384xf32>
    %19 = arith.addf %16, %18 : vector<8x384xf32>
    %cst_16 = arith.constant 0.000000e+00 : f32
    %20 = vector.broadcast %cst_16 : f32 to vector<8x384xf32>
    %21 = arith.maximumf %19, %20 : vector<8x384xf32>
    %c0_17 = arith.constant 0 : index
    %c0_18 = arith.constant 0 : index
    %22 = vector.load %arg8[%c0_17, %c0_18] : memref<1x384xbf16, #tpu.memory_space<vmem>>, vector<1x384xbf16>
    %23 = arith.extf %22 : vector<1x384xbf16> to vector<1x384xf32>
    %24 = vector.broadcast %23 : vector<1x384xf32> to vector<8x384xf32>
    %25 = arith.mulf %21, %24 : vector<8x384xf32>
    %cst_19 = arith.constant dense<0.000000e+00> : vector<8xf32>
    %26 = vector.multi_reduction <add>, %25, %cst_19 [1] : vector<8x384xf32> to vector<8xf32>
    %27 = vector.shape_cast %26 : vector<8xf32> to vector<8x1xf32>
    %c0_20 = arith.constant 0 : index
    %c0_21 = arith.constant 0 : index
    %28 = vector.load %arg9[%c0_20, %c0_21] : memref<1x1xf32, #tpu.memory_space<vmem>>, vector<1x1xf32>
    %29 = vector.broadcast %28 : vector<1x1xf32> to vector<8x1xf32>
    %30 = arith.addf %27, %29 : vector<8x1xf32>
    %c0_22 = arith.constant 0 : index
    %c0_23 = arith.constant 0 : index
    %31 = vector.load %arg10[%c0_22, %c0_23] : memref<8x1xf32, #tpu.memory_space<vmem>>, vector<8x1xf32>
    tpu.vector_store %arg10[%c0_22, %c0_23], %30 {strides = array<i32>} : memref<8x1xf32, #tpu.memory_space<vmem>>, vector<8x1xf32>,
    return
  }
  func.func @transform_0(%arg0: i32) -> (i32, i32) {
    %c0_i32 = arith.constant 0 : i32
    %c0_i32_0 = arith.constant 0 : i32
    return %arg0, %c0_i32 : i32, i32
  }
  func.func @transform_1(%arg0: i32) -> (i32, i32) {
    %c0_i32 = arith.constant 0 : i32
    %c0_i32_0 = arith.constant 0 : i32
    return %arg0, %c0_i32 : i32, i32
  }
  func.func @transform_2(%arg0: i32) -> (i32, i32) {
    %c0_i32 = arith.constant 0 : i32
    %c0_i32_0 = arith.constant 0 : i32
    %c0_i32_1 = arith.constant 0 : i32
    return %c0_i32, %c0_i32_0 : i32, i32
  }
  func.func @transform_3(%arg0: i32) -> (i32, i32) {
    %c0_i32 = arith.constant 0 : i32
    %c0_i32_0 = arith.constant 0 : i32
    %c0_i32_1 = arith.constant 0 : i32
    return %c0_i32, %c0_i32_0 : i32, i32
  }
  func.func @transform_4(%arg0: i32) -> (i32, i32) {
    %c0_i32 = arith.constant 0 : i32
    %c0_i32_0 = arith.constant 0 : i32
    %c0_i32_1 = arith.constant 0 : i32
    return %c0_i32, %c0_i32_0 : i32, i32
  }
  func.func @transform_5(%arg0: i32) -> (i32, i32) {
    %c0_i32 = arith.constant 0 : i32
    %c0_i32_0 = arith.constant 0 : i32
    %c0_i32_1 = arith.constant 0 : i32
    return %c0_i32, %c0_i32_0 : i32, i32
  }
  func.func @transform_6(%arg0: i32) -> (i32, i32) {
    %c0_i32 = arith.constant 0 : i32
    %c0_i32_0 = arith.constant 0 : i32
    %c0_i32_1 = arith.constant 0 : i32
    return %c0_i32, %c0_i32_0 : i32, i32
  }
  func.func @transform_7(%arg0: i32) -> (i32, i32) {
    %c0_i32 = arith.constant 0 : i32
    %c0_i32_0 = arith.constant 0 : i32
    %c0_i32_1 = arith.constant 0 : i32
    return %c0_i32, %c0_i32_0 : i32, i32
  }
  func.func @transform_8(%arg0: i32) -> (i32, i32) {
    %c0_i32 = arith.constant 0 : i32
    %c0_i32_0 = arith.constant 0 : i32
    %c0_i32_1 = arith.constant 0 : i32
    return %c0_i32, %c0_i32_0 : i32, i32
  }
  func.func @transform_9(%arg0: i32) -> (i32, i32) {
    %c0_i32 = arith.constant 0 : i32
    %c0_i32_0 = arith.constant 0 : i32
    return %arg0, %c0_i32 : i32, i32
  }
}

</mosaic_0001>

<llo_original>
// kernel: critic_forward.1
$region0: #{critic_forward.1}
  #allocation0 [shape = 'u32[]', space=smem, size = 0x4, offset = 0x4, fixed_abs, tag = 'smem constant byte address 0x4 - core index']
  #allocation1 [shape = 'u32[144,128]{1,0:T(1,128)}', space=vmem, size = 0x12000, scoped, tag = 'internal scratch']
  #allocation2 [shape = 'f32[1,1]{1,0:T(1,128)S(1)}', space=vmem, size = 0x200, scoped, tag = 'scoped memory for critic_forward.1']
  %s0 = inlined_call_operand.hbm [shape: f32[8,27], index: 0, kind: input, shape index: {}]
  %s1 = inlined_call_operand.hbm [shape: f32[8,8], index: 1, kind: input, shape index: {}]
  %s2 = inlined_call_operand.hbm [shape: bf16[27,512], index: 2, kind: input, shape index: {}]
  %s3 = inlined_call_operand.hbm [shape: bf16[8,512], index: 3, kind: input, shape index: {}]
  %s4 = inlined_call_operand.vmem [shape: f32[1,512], index: 4, kind: input, shape index: {}]
  %s5 = inlined_call_operand.hbm [shape: bf16[512,384], index: 5, kind: input, shape index: {}]
  %s6 = inlined_call_operand.vmem [shape: f32[1,384], index: 6, kind: input, shape index: {}]
  %s7 = inlined_call_operand.vmem [shape: bf16[1,384], index: 7, kind: input, shape index: {}]
  %s8 = inlined_call_operand.<no memory space> [shape: f32[1,1], index: 8, kind: input, shape index: {}]
  %s9 = inlined_call_operand.vmem [shape: f32[8,1], index: 9, kind: output, shape index: {}]
  %s10 = sld [smem:[#allocation0]]
  $region66: #{critic_forward.1} parent=0
    _
  %s12 = ssub.s32 1, %s10
  %s13 = scalar_select 0, %s12, %s10
  %v14 = vstv %s8
  %15 = vst [vmem:[#allocation2] sm:$0x1] %v14
  $region1: #{critic_forward.1} parent=0
    #allocation3 [shape = 'u8[4096]{0}', space=vmem, size = 0x1000, scoped, tag = 'input window, operand 0, single buffered']
    #allocation4 [shape = 's32[1]{0}', space=sflag, size = 0x4, scoped, tag = 'scoped memory for critic_forward.1']
    #allocation5 [shape = 'u8[4096]{0}', space=vmem, size = 0x1000, scoped, tag = 'input window, operand 1, single buffered']
    #allocation6 [shape = 's32[1]{0}', space=sflag, size = 0x4, scoped, tag = 'scoped memory for critic_forward.1']
    #allocation7 [shape = 'u8[32768]{0}', space=vmem, size = 0x8000, scoped, tag = 'input window, operand 2, single buffered']
    #allocation8 [shape = 'u8[8192]{0}', space=vmem, size = 0x2000, scoped, tag = 'input window, operand 3, single buffered']
    #allocation9 [shape = 's32[1]{0}', space=sflag, size = 0x4, scoped, tag = 'scoped memory for critic_forward.1']
    #allocation10 [shape = 'u8[393216]{0}', space=vmem, size = 0x60000, scoped, tag = 'input window, operand 5, single buffered']
    %16 = vsyncpa [#allocation4], 0
    %17 = vsyncpa [#allocation6], 0
    %18 = vsyncpa [#allocation9], 0
    // Predicated region
    $region2: #{critic_forward.1} parent=1 // pred_check
      _
    $region3: #{critic_forward.1} parent=1 // pred_check_branch
      %20 = sbr.rel (0) target = $region5
    $region4: #{critic_forward.1} parent=1 // pred_region
      %s22 = ssub.s32 128, 128
      %23 = vsyncadd [#allocation4], %s22
      %s25 = sshll.u32 [#allocation3], 4
      %s26 = int_to_ptr.vmem [resolvable:$true] %s25
      %28 = dma.hbm_to_vmem [thread:$0]  %s0, 128, %s26, [#allocation4]
    $region5: #{critic_forward.1} parent=1 // pred_fallthru
      _
    // Predicated region
    $region6: #{critic_forward.1} parent=1 // pred_check
      _
    $region7: #{critic_forward.1} parent=1 // pred_check_branch
      %30 = sbr.rel (0) target = $region9
    $region8: #{critic_forward.1} parent=1 // pred_region
      %s32 = ssub.s32 128, 128
      %33 = vsyncadd [#allocation6], %s32
      %s35 = sshll.u32 [#allocation5], 4
      %s36 = int_to_ptr.vmem [resolvable:$true] %s35
      %38 = dma.hbm_to_vmem [thread:$0]  %s1, 128, %s36, [#allocation6]
    $region9: #{critic_forward.1} parent=1 // pred_fallthru
      _
    // Predicated region
    $region10: #{critic_forward.1} parent=1 // pred_check
      _
    $region11: #{critic_forward.1} parent=1 // pred_check_branch
      %40 = sbr.rel (0) target = $region13
    $region12: #{critic_forward.1} parent=1 // pred_region
      %s42 = ssub.s32 1024, 1024
      %43 = vsyncadd [#allocation6], %s42
      %s44 = sshll.u32 [#allocation7], 4
      %s45 = int_to_ptr.vmem [resolvable:$true] %s44
      %50 = dma.hbm_to_vmem [thread:$0]  %s2, 1024, %s45, [#allocation6], 256, 256, 16
    $region13: #{critic_forward.1} parent=1 // pred_fallthru
      _
    // Predicated region
    $region14: #{critic_forward.1} parent=1 // pred_check
      _
    $region15: #{critic_forward.1} parent=1 // pred_check_branch
      %52 = sbr.rel (0) target = $region17
    $region16: #{critic_forward.1} parent=1 // pred_region
      %s54 = ssub.s32 256, 256
      %55 = vsyncadd [#allocation9], %s54
      %s57 = sshll.u32 [#allocation8], 4
      %s58 = int_to_ptr.vmem [resolvable:$true] %s57
      %60 = dma.hbm_to_vmem [thread:$0]  %s3, 256, %s58, [#allocation9]
    $region17: #{critic_forward.1} parent=1 // pred_fallthru
      _
    // Predicated region
    $region18: #{critic_forward.1} parent=1 // pred_check
      _
    $region19: #{critic_forward.1} parent=1 // pred_check_branch
      %62 = sbr.rel (0) target = $region21
    $region20: #{critic_forward.1} parent=1 // pred_region
      _
    $region21: #{critic_forward.1} parent=1 // pred_fallthru
      _
    // Predicated region
    $region22: #{critic_forward.1} parent=1 // pred_check
      _
    $region23: #{critic_forward.1} parent=1 // pred_check_branch
      %64 = sbr.rel (0) target = $region25
    $region24: #{critic_forward.1} parent=1 // pred_region
      %s66 = ssub.s32 12288, 12288
      %67 = vsyncadd [#allocation9], %s66
      %s68 = sshll.u32 [#allocation10], 4
      %s69 = int_to_ptr.vmem [resolvable:$true] %s68
      %74 = dma.hbm_to_vmem [thread:$0]  %s5, 12288, %s69, [#allocation9], 192, 192, 12
    $region25: #{critic_forward.1} parent=1 // pred_fallthru
      _
    // Predicated region
    $region26: #{critic_forward.1} parent=1 // pred_check
      _
    $region27: #{critic_forward.1} parent=1 // pred_check_branch
      %76 = sbr.rel (0) target = $region29
    $region28: #{critic_forward.1} parent=1 // pred_region
      _
    $region29: #{critic_forward.1} parent=1 // pred_fallthru
      _
    // Predicated region
    $region30: #{critic_forward.1} parent=1 // pred_check
      _
    $region31: #{critic_forward.1} parent=1 // pred_check_branch
      %78 = sbr.rel (0) target = $region33
    $region32: #{critic_forward.1} parent=1 // pred_region
      _
    $region33: #{critic_forward.1} parent=1 // pred_fallthru
      _
    // Predicated region
    $region34: #{critic_forward.1} parent=1 // pred_check
      _
    $region35: #{critic_forward.1} parent=1 // pred_check_branch
      %80 = sbr.rel (0) target = $region37
    $region36: #{critic_forward.1} parent=1 // pred_region
      _
    $region37: #{critic_forward.1} parent=1 // pred_fallthru
      _
    // Predicated region
    $region38: #{critic_forward.1} parent=1 // pred_check
      _
    $region39: #{critic_forward.1} parent=1 // pred_check_branch
      %82 = sbr.rel (0) target = $region41
    $region40: #{critic_forward.1} parent=1 // pred_region
      %83 = dma.done [#allocation4], 128
    $region41: #{critic_forward.1} parent=1 // pred_fallthru
      _
    // Predicated region
    $region42: #{critic_forward.1} parent=1 // pred_check
      _
    $region43: #{critic_forward.1} parent=1 // pred_check_branch
      %85 = sbr.rel (0) target = $region45
    $region44: #{critic_forward.1} parent=1 // pred_region
      %86 = dma.done [#allocation6], 128
    $region45: #{critic_forward.1} parent=1 // pred_fallthru
      _
    // Predicated region
    $region46: #{critic_forward.1} parent=1 // pred_check
      _
    $region47: #{critic_forward.1} parent=1 // pred_check_branch
      %88 = sbr.rel (0) target = $region49
    $region48: #{critic_forward.1} parent=1 // pred_region
      %89 = dma.done [#allocation6], 1024
    $region49: #{critic_forward.1} parent=1 // pred_fallthru
      _
    // Predicated region
    $region50: #{critic_forward.1} parent=1 // pred_check
      _
    $region51: #{critic_forward.1} parent=1 // pred_check_branch
      %91 = sbr.rel (0) target = $region53
    $region52: #{critic_forward.1} parent=1 // pred_region
      %92 = dma.done [#allocation9], 256
    $region53: #{critic_forward.1} parent=1 // pred_fallthru
      _
    // Predicated region
    $region54: #{critic_forward.1} parent=1 // pred_check
      _
    $region55: #{critic_forward.1} parent=1 // pred_check_branch
      %94 = sbr.rel (0) target = $region57
    $region56: #{critic_forward.1} parent=1 // pred_region
      %95 = dma.done [#allocation9], 12288
    $region57: #{critic_forward.1} parent=1 // pred_fallthru
      _
    %v97 = vld [vmem:[#allocation3] sm:$0xff]
    %v98 = vpack.c.bf16 %v97, %v97
    %v99 = vld [vmem:[#allocation5] sm:$0xff]
    %v100 = vpack.c.bf16 %v99, %v99
    %v101 = vld [vmem:[#allocation7] sm:$0xff]
    %v102 = vld [vmem:[#allocation7 + $0x8] sm:$0xff]
    %v103 = vld [vmem:[#allocation7 + $0x10] sm:$0xff]
    %v104 = vld [vmem:[#allocation7 + $0x18] sm:$0xff]
    %v105 = vld [vmem:[#allocation7 + $0x20] sm:$0xff]
    %v106 = vld [vmem:[#allocation7 + $0x28] sm:$0xff]
    %v107 = vld [vmem:[#allocation7 + $0x30] sm:$0x33]
    %v108 = vld [vmem:[#allocation7 + $0x38] sm:$0x33]
    %v109 = vld [vmem:[#allocation8] sm:$0xff]
    %v110 = vld [vmem:[#allocation8 + $0x8] sm:$0xff]
    %v113 = vunpack.c.l.b16 %v109
    %v114 = vunpack.c.h.b16 %v109
    %v115 = vunpack.c.l.b16 %v110
    %v116 = vunpack.c.h.b16 %v110
    %v117 = vpack.c.b16 %v113, %v113
    %v118 = vpack.c.b16 %v114, %v114
    %v119 = vpack.c.b16 %v115, %v115
    %v120 = vpack.c.b16 %v116, %v116
    %vm121 = vcmask 64512
    %v123 = vsel %vm121, %v100, 0
    %vm125 = vcmask 1043456
    %v127 = vsel %vm125, %v117, 0
    %v130 = vsel %vm125, %v118, 0
    %v133 = vsel %vm125, %v119, 0
    %v136 = vsel %vm125, %v120, 0
    %138 = vmatprep.subr.bf16.mxu0 0
    %139 = vmatpush1.bf16.msra.mxu0 0
    %140 = vmatprep.subr.bf16.mxu0 0
    %141 = vmatpush1.bf16.msra.mxu0 0
    %142 = vmatprep.subr.bf16.mxu0 0
    %143 = vmatpush1.bf16.msra.mxu0 0
    %144 = vmatprep.subr.bf16.mxu0 0
    %145 = vmatpush1.bf16.msra.mxu0 0
    %146 = vmatprep.subr.bf16.mxu0 0
    %147 = vmatpush1.bf16.msra.mxu0 0
    %148 = vmatprep.subr.bf16.mxu0 0
    %149 = vmatpush1.bf16.msra.mxu0 0
    %150 = vmatprep.subr.bf16.mxu0 0
    %151 = vmatpush1.bf16.msra.mxu0 0
    %152 = vmatprep.subr.bf16.mxu0 %v130
    %153 = vmatpush1.bf16.msra.mxu0 %v127
    %154 = vmatprep.subr.bf16.mxu0 0
    %155 = vmatpush2.bf16.msra.mxu0 0
    %156 = vmatprep.subr.bf16.mxu0 0
    %157 = vmatpush2.bf16.msra.mxu0 0
    %158 = vmatprep.subr.bf16.mxu0 0
    %159 = vmatpush2.bf16.msra.mxu0 0
    %160 = vmatprep.subr.bf16.mxu0 0
    %161 = vmatpush2.bf16.msra.mxu0 0
    %162 = vmatprep.subr.bf16.mxu0 0
    %163 = vmatpush2.bf16.msra.mxu0 0
    %164 = vmatprep.subr.bf16.mxu0 0
    %165 = vmatpush2.bf16.msra.mxu0 0
    %166 = vmatprep.subr.bf16.mxu0 0
    %167 = vmatpush2.bf16.msra.mxu0 0
    %168 = vmatprep.subr.bf16.mxu0 0
    %169 = vmatpush2.bf16.msra.mxu0 0
    %170 = vmatprep.mubr.bf16.mxu0 0
    %171 = vmatmul.mubr.bf16.gmra.mxu0 %v123
    %v172 = vpop.f32.mrf.mxu0
    %v173 = vadd.f32 0.0, %v172
    %v174 = vpop.f32.mrf.mxu0
    %v175 = vadd.f32 0.0, %v174
    %v176 = vpop.f32.mrf.mxu0
    %v177 = vpop.f32.mrf.mxu0
    %178 = vdwg.mxu0
    %179 = vmatprep.subr.bf16.mxu0 0
    %180 = vmatpush1.bf16.msra.mxu0 0
    %181 = vmatprep.subr.bf16.mxu0 0
    %182 = vmatpush1.bf16.msra.mxu0 0
    %183 = vmatprep.subr.bf16.mxu0 0
    %184 = vmatpush1.bf16.msra.mxu0 0
    %185 = vmatprep.subr.bf16.mxu0 0
    %186 = vmatpush1.bf16.msra.mxu0 0
    %187 = vmatprep.subr.bf16.mxu0 0
    %188 = vmatpush1.bf16.msra.mxu0 0
    %189 = vmatprep.subr.bf16.mxu0 0
    %190 = vmatpush1.bf16.msra.mxu0 0
    %191 = vmatprep.subr.bf16.mxu0 0
    %192 = vmatpush1.bf16.msra.mxu0 0
    %193 = vmatprep.subr.bf16.mxu0 %v136
    %194 = vmatpush1.bf16.msra.mxu0 %v133
    %195 = vmatprep.subr.bf16.mxu0 0
    %196 = vmatpush2.bf16.msra.mxu0 0
    %197 = vmatprep.subr.bf16.mxu0 0
    %198 = vmatpush2.bf16.msra.mxu0 0
    %199 = vmatprep.subr.bf16.mxu0 0
    %200 = vmatpush2.bf16.msra.mxu0 0
    %201 = vmatprep.subr.bf16.mxu0 0
    %202 = vmatpush2.bf16.msra.mxu0 0
    %203 = vmatprep.subr.bf16.mxu0 0
    %204 = vmatpush2.bf16.msra.mxu0 0
    %205 = vmatprep.subr.bf16.mxu0 0
    %206 = vmatpush2.bf16.msra.mxu0 0
    %207 = vmatprep.subr.bf16.mxu0 0
    %208 = vmatpush2.bf16.msra.mxu0 0
    %209 = vmatprep.subr.bf16.mxu0 0
    %210 = vmatpush2.bf16.msra.mxu0 0
    %211 = vmatprep.mubr.bf16.mxu0 0
    %212 = vmatmul.mubr.bf16.gmra.mxu0 %v123
    %v213 = vpop.f32.mrf.mxu0
    %v214 = vadd.f32 0.0, %v213
    %v215 = vpop.f32.mrf.mxu0
    %v216 = vadd.f32 0.0, %v215
    %v217 = vpop.f32.mrf.mxu0
    %v218 = vpop.f32.mrf.mxu0
    %219 = vdwg.mxu0
    %v228 = vunpack.c.l.b16 %v101
    %v229 = vunpack.c.h.b16 %v101
    %v230 = vunpack.c.l.b16 %v102
    %v231 = vunpack.c.h.b16 %v102
    %v232 = vunpack.c.l.b16 %v103
    %v233 = vunpack.c.h.b16 %v103
    %v234 = vunpack.c.l.b16 %v104
    %v235 = vunpack.c.h.b16 %v104
    %v236 = vunpack.c.l.b16 %v105
    %v237 = vunpack.c.h.b16 %v105
    %v238 = vunpack.c.l.b16 %v106
    %v239 = vunpack.c.h.b16 %v106
    %v240 = vunpack.c.l.b16 %v107
    %v241 = vunpack.c.h.b16 %v107
    %v242 = vunpack.c.l.b16 %v108
    %v243 = vunpack.c.h.b16 %v108
    %v244 = vpack.c.b16 %v232, %v228
    %v245 = vpack.c.b16 %v233, %v229
    %v246 = vpack.c.b16 %v234, %v230
    %v247 = vpack.c.b16 %v235, %v231
    %v248 = vpack.c.b16 %v240, %v236
    %v249 = vpack.c.b16 %v241, %v237
    %v250 = vpack.c.b16 %v242, %v238
    %v251 = vpack.c.b16 %v243, %v239
    %vm256 = vcmask 220160
    %v258 = vsel %vm256, %v98, 0
    %vm260 = vcmask 1044480
    %vm261 = vcmask 1045504
    %v262 = vsel %vm260, 4294967295, 65535
    %v263 = vsel %vm261, %v262, 0
    %v265 = vand.u32 %v248, %v263
    %v268 = vand.u32 %v249, %v263
    %v271 = vand.u32 %v250, %v263
    %v274 = vand.u32 %v251, %v263
    %276 = vmatprep.subr.bf16.mxu0 0
    %277 = vmatpush1.bf16.msra.mxu0 0
    %278 = vmatprep.subr.bf16.mxu0 0
    %279 = vmatpush1.bf16.msra.mxu0 0
    %280 = vmatprep.subr.bf16.mxu0 0
    %281 = vmatpush1.bf16.msra.mxu0 0
    %282 = vmatprep.subr.bf16.mxu0 0
    %283 = vmatpush1.bf16.msra.mxu0 0
    %284 = vmatprep.subr.bf16.mxu0 0
    %285 = vmatpush1.bf16.msra.mxu0 0
    %286 = vmatprep.subr.bf16.mxu0 0
    %287 = vmatpush1.bf16.msra.mxu0 0
    %288 = vmatprep.subr.bf16.mxu0 %v268
    %289 = vmatpush1.bf16.msra.mxu0 %v265
    %290 = vmatprep.subr.bf16.mxu0 %v245
    %291 = vmatpush1.bf16.msra.mxu0 %v244
    %292 = vmatprep.subr.bf16.mxu0 0
    %293 = vmatpush2.bf16.msra.mxu0 0
    %294 = vmatprep.subr.bf16.mxu0 0
    %295 = vmatpush2.bf16.msra.mxu0 0
    %296 = vmatprep.subr.bf16.mxu0 0
    %297 = vmatpush2.bf16.msra.mxu0 0
    %298 = vmatprep.subr.bf16.mxu0 0
    %299 = vmatpush2.bf16.msra.mxu0 0
    %300 = vmatprep.subr.bf16.mxu0 0
    %301 = vmatpush2.bf16.msra.mxu0 0
    %302 = vmatprep.subr.bf16.mxu0 0
    %303 = vmatpush2.bf16.msra.mxu0 0
    %304 = vmatprep.subr.bf16.mxu0 0
    %305 = vmatpush2.bf16.msra.mxu0 0
    %306 = vmatprep.subr.bf16.mxu0 0
    %307 = vmatpush2.bf16.msra.mxu0 0
    %308 = vmatprep.mubr.bf16.mxu0 0
    %309 = vmatmul.mubr.bf16.gmra.mxu0 %v258
    %v310 = vpop.f32.mrf.mxu0
    %v311 = vadd.f32 %v173, %v310
    %v312 = vpop.f32.mrf.mxu0
    %v313 = vadd.f32 %v175, %v312
    %v314 = vpop.f32.mrf.mxu0
    %v315 = vpop.f32.mrf.mxu0
    %316 = vdwg.mxu0
    %317 = vmatprep.subr.bf16.mxu0 0
    %318 = vmatpush1.bf16.msra.mxu0 0
    %319 = vmatprep.subr.bf16.mxu0 0
    %320 = vmatpush1.bf16.msra.mxu0 0
    %321 = vmatprep.subr.bf16.mxu0 0
    %322 = vmatpush1.bf16.msra.mxu0 0
    %323 = vmatprep.subr.bf16.mxu0 0
    %324 = vmatpush1.bf16.msra.mxu0 0
    %325 = vmatprep.subr.bf16.mxu0 0
    %326 = vmatpush1.bf16.msra.mxu0 0
    %327 = vmatprep.subr.bf16.mxu0 0
    %328 = vmatpush1.bf16.msra.mxu0 0
    %329 = vmatprep.subr.bf16.mxu0 %v274
    %330 = vmatpush1.bf16.msra.mxu0 %v271
    %331 = vmatprep.subr.bf16.mxu0 %v247
    %332 = vmatpush1.bf16.msra.mxu0 %v246
    %333 = vmatprep.subr.bf16.mxu0 0
    %334 = vmatpush2.bf16.msra.mxu0 0
    %335 = vmatprep.subr.bf16.mxu0 0
    %336 = vmatpush2.bf16.msra.mxu0 0
    %337 = vmatprep.subr.bf16.mxu0 0
    %338 = vmatpush2.bf16.msra.mxu0 0
    %339 = vmatprep.subr.bf16.mxu0 0
    %340 = vmatpush2.bf16.msra.mxu0 0
    %341 = vmatprep.subr.bf16.mxu0 0
    %342 = vmatpush2.bf16.msra.mxu0 0
    %343 = vmatprep.subr.bf16.mxu0 0
    %344 = vmatpush2.bf16.msra.mxu0 0
    %345 = vmatprep.subr.bf16.mxu0 0
    %346 = vmatpush2.bf16.msra.mxu0 0
    %347 = vmatprep.subr.bf16.mxu0 0
    %348 = vmatpush2.bf16.msra.mxu0 0
    %349 = vmatprep.mubr.bf16.mxu0 0
    %350 = vmatmul.mubr.bf16.gmra.mxu0 %v258
    %v351 = vpop.f32.mrf.mxu0
    %v352 = vadd.f32 %v214, %v351
    %v353 = vpop.f32.mrf.mxu0
    %v354 = vadd.f32 %v216, %v353
    %v355 = vpop.f32.mrf.mxu0
    %v356 = vpop.f32.mrf.mxu0
    %357 = vdwg.mxu0
    %v358 = vld [vmem:[%s4] sm:$0xf]
    %v360 = vlaneseq
    %v361 = vshrl.u32 %v360, 7
    %v362 = vsub.s32 0, %v361
    %v363 = vrot.slane %v358, %v362
    %v364 = vlaneseq
    %v365 = vshrl.u32 %v364, 7
    %v366 = vsub.s32 1, %v365
    %v367 = vrot.slane %v358, %v366
    %v368 = vlaneseq
    %v369 = vshrl.u32 %v368, 7
    %v370 = vsub.s32 2, %v369
    %v371 = vrot.slane %v358, %v370
    %v372 = vlaneseq
    %v373 = vshrl.u32 %v372, 7
    %v374 = vsub.s32 3, %v373
    %v375 = vrot.slane %v358, %v374
    %v380 = vadd.f32 %v311, %v363
    %v381 = vadd.f32 %v313, %v367
    %v382 = vadd.f32 %v352, %v371
    %v383 = vadd.f32 %v354, %v375
    %v384 = vmax.f32 %v380, 0.0
    %v385 = vmax.f32 %v381, 0.0
    %v386 = vmax.f32 %v382, 0.0
    %v387 = vmax.f32 %v383, 0.0
    %v388 = vpack.c.bf16 %v384, %v384
    %v389 = vpack.c.bf16 %v385, %v385
    %v390 = vpack.c.bf16 %v386, %v386
    %v391 = vpack.c.bf16 %v387, %v387
    %v392 = vld [vmem:[#allocation10] sm:$0xff]
    %v393 = vld [vmem:[#allocation10 + $0x8] sm:$0xf]
    %v394 = vld [vmem:[#allocation10 + $0xc] sm:$0xff]
    %v395 = vld [vmem:[#allocation10 + $0x14] sm:$0xf]
    %v396 = vld [vmem:[#allocation10 + $0x18] sm:$0xff]
    %v397 = vld [vmem:[#allocation10 + $0x20] sm:$0xf]
    %v398 = vld [vmem:[#allocation10 + $0x24] sm:$0xff]
    %v399 = vld [vmem:[#allocation10 + $0x2c] sm:$0xf]
    %v400 = vld [vmem:[#allocation10 + $0x30] sm:$0xff]
    %v401 = vld [vmem:[#allocation10 + $0x38] sm:$0xf]
    %v402 = vld [vmem:[#allocation10 + $0x3c] sm:$0xff]
    %v403 = vld [vmem:[#allocation10 + $0x44] sm:$0xf]
    %v404 = vld [vmem:[#allocation10 + $0x48] sm:$0xff]
    %v405 = vld [vmem:[#allocation10 + $0x50] sm:$0xf]
    %v406 = vld [vmem:[#allocation10 + $0x54] sm:$0xff]
    %v407 = vld [vmem:[#allocation10 + $0x5c] sm:$0xf]
    %v408 = vld [vmem:[#allocation10 + $0x60] sm:$0xff]
    %v409 = vld [vmem:[#allocation10 + $0x68] sm:$0xf]
    %v410 = vld [vmem:[#allocation10 + $0x6c] sm:$0xff]
    %v411 = vld [vmem:[#allocation10 + $0x74] sm:$0xf]
    %v412 = vld [vmem:[#allocation10 + $0x78] sm:$0xff]
    %v413 = vld [vmem:[#allocation10 + $0x80] sm:$0xf]
    %v414 = vld [vmem:[#allocation10 + $0x84] sm:$0xff]
    %v415 = vld [vmem:[#allocation10 + $0x8c] sm:$0xf]
    %v416 = vld [vmem:[#allocation10 + $0x90] sm:$0xff]
    %v417 = vld [vmem:[#allocation10 + $0x98] sm:$0xf]
    %v418 = vld [vmem:[#allocation10 + $0x9c] sm:$0xff]
    %v419 = vld [vmem:[#allocation10 + $0xa4] sm:$0xf]
    %v420 = vld [vmem:[#allocation10 + $0xa8] sm:$0xff]
    %v421 = vld [vmem:[#allocation10 + $0xb0] sm:$0xf]
    %v422 = vld [vmem:[#allocation10 + $0xb4] sm:$0xff]
    %v423 = vld [vmem:[#allocation10 + $0xbc] sm:$0xf]
    %v424 = vld [vmem:[#allocation10 + $0xc0] sm:$0xff]
    %v425 = vld [vmem:[#allocation10 + $0xc8] sm:$0xf]
    %v426 = vld [vmem:[#allocation10 + $0xcc] sm:$0xff]
    %v427 = vld [vmem:[#allocation10 + $0xd4] sm:$0xf]
    %v428 = vld [vmem:[#allocation10 + $0xd8] sm:$0xff]
    %v429 = vld [vmem:[#allocation10 + $0xe0] sm:$0xf]
    %v430 = vld [vmem:[#allocation10 + $0xe4] sm:$0xff]
    %v431 = vld [vmem:[#allocation10 + $0xec] sm:$0xf]
    %v432 = vld [vmem:[#allocation10 + $0xf0] sm:$0xff]
    %v433 = vld [vmem:[#allocation10 + $0xf8] sm:$0xf]
    %v434 = vld [vmem:[#allocation10 + $0xfc] sm:$0xff]
    %v435 = vld [vmem:[#allocation10 + $0x104] sm:$0xf]
    %v436 = vld [vmem:[#allocation10 + $0x108] sm:$0xff]
    %v437 = vld [vmem:[#allocation10 + $0x110] sm:$0xf]
    %v438 = vld [vmem:[#allocation10 + $0x114] sm:$0xff]
    %v439 = vld [vmem:[#allocation10 + $0x11c] sm:$0xf]
    %v440 = vld [vmem:[#allocation10 + $0x120] sm:$0xff]
    %v441 = vld [vmem:[#allocation10 + $0x128] sm:$0xf]
    %v442 = vld [vmem:[#allocation10 + $0x12c] sm:$0xff]
    %v443 = vld [vmem:[#allocation10 + $0x134] sm:$0xf]
    %v444 = vld [vmem:[#allocation10 + $0x138] sm:$0xff]
    %v445 = vld [vmem:[#allocation10 + $0x140] sm:$0xf]
    %v446 = vld [vmem:[#allocation10 + $0x144] sm:$0xff]
    %v447 = vld [vmem:[#allocation10 + $0x14c] sm:$0xf]
    %v448 = vld [vmem:[#allocation10 + $0x150] sm:$0xff]
    %v449 = vld [vmem:[#allocation10 + $0x158] sm:$0xf]
    %v450 = vld [vmem:[#allocation10 + $0x15c] sm:$0xff]
    %v451 = vld [vmem:[#allocation10 + $0x164] sm:$0xf]
    %v452 = vld [vmem:[#allocation10 + $0x168] sm:$0xff]
    %v453 = vld [vmem:[#allocation10 + $0x170] sm:$0xf]
    %v454 = vld [vmem:[#allocation10 + $0x174] sm:$0xff]
    %v455 = vld [vmem:[#allocation10 + $0x17c] sm:$0xf]
    %v456 = vld [vmem:[#allocation10 + $0x180] sm:$0xff]
    %v457 = vld [vmem:[#allocation10 + $0x188] sm:$0xf]
    %v458 = vld [vmem:[#allocation10 + $0x18c] sm:$0xff]
    %v459 = vld [vmem:[#allocation10 + $0x194] sm:$0xf]
    %v460 = vld [vmem:[#allocation10 + $0x198] sm:$0xff]
    %v461 = vld [vmem:[#allocation10 + $0x1a0] sm:$0xf]
    %v462 = vld [vmem:[#allocation10 + $0x1a4] sm:$0xff]
    %v463 = vld [vmem:[#allocation10 + $0x1ac] sm:$0xf]
    %v464 = vld [vmem:[#allocation10 + $0x1b0] sm:$0xff]
    %v465 = vld [vmem:[#allocation10 + $0x1b8] sm:$0xf]
    %v466 = vld [vmem:[#allocation10 + $0x1bc] sm:$0xff]
    %v467 = vld [vmem:[#allocation10 + $0x1c4] sm:$0xf]
    %v468 = vld [vmem:[#allocation10 + $0x1c8] sm:$0xff]
    %v469 = vld [vmem:[#allocation10 + $0x1d0] sm:$0xf]
    %v470 = vld [vmem:[#allocation10 + $0x1d4] sm:$0xff]
    %v471 = vld [vmem:[#allocation10 + $0x1dc] sm:$0xf]
    %v472 = vld [vmem:[#allocation10 + $0x1e0] sm:$0xff]
    %v473 = vld [vmem:[#allocation10 + $0x1e8] sm:$0xf]
    %v474 = vld [vmem:[#allocation10 + $0x1ec] sm:$0xff]
    %v475 = vld [vmem:[#allocation10 + $0x1f4] sm:$0xf]
    %v476 = vld [vmem:[#allocation10 + $0x1f8] sm:$0xff]
    %v477 = vld [vmem:[#allocation10 + $0x200] sm:$0xf]
    %v478 = vld [vmem:[#allocation10 + $0x204] sm:$0xff]
    %v479 = vld [vmem:[#allocation10 + $0x20c] sm:$0xf]
    %v480 = vld [vmem:[#allocation10 + $0x210] sm:$0xff]
    %v481 = vld [vmem:[#allocation10 + $0x218] sm:$0xf]
    %v482 = vld [vmem:[#allocation10 + $0x21c] sm:$0xff]
    %v483 = vld [vmem:[#allocation10 + $0x224] sm:$0xf]
    %v484 = vld [vmem:[#allocation10 + $0x228] sm:$0xff]
    %v485 = vld [vmem:[#allocation10 + $0x230] sm:$0xf]
    %v486 = vld [vmem:[#allocation10 + $0x234] sm:$0xff]
    %v487 = vld [vmem:[#allocation10 + $0x23c] sm:$0xf]
    %v488 = vld [vmem:[#allocation10 + $0x240] sm:$0xff]
    %v489 = vld [vmem:[#allocation10 + $0x248] sm:$0xf]
    %v490 = vld [vmem:[#allocation10 + $0x24c] sm:$0xff]
    %v491 = vld [vmem:[#allocation10 + $0x254] sm:$0xf]
    %v492 = vld [vmem:[#allocation10 + $0x258] sm:$0xff]
    %v493 = vld [vmem:[#allocation10 + $0x260] sm:$0xf]
    %v494 = vld [vmem:[#allocation10 + $0x264] sm:$0xff]
    %v495 = vld [vmem:[#allocation10 + $0x26c] sm:$0xf]
    %v496 = vld [vmem:[#allocation10 + $0x270] sm:$0xff]
    %v497 = vld [vmem:[#allocation10 + $0x278] sm:$0xf]
    %v498 = vld [vmem:[#allocation10 + $0x27c] sm:$0xff]
    %v499 = vld [vmem:[#allocation10 + $0x284] sm:$0xf]
    %v500 = vld [vmem:[#allocation10 + $0x288] sm:$0xff]
    %v501 = vld [vmem:[#allocation10 + $0x290] sm:$0xf]
    %v502 = vld [vmem:[#allocation10 + $0x294] sm:$0xff]
    %v503 = vld [vmem:[#allocation10 + $0x29c] sm:$0xf]
    %v504 = vld [vmem:[#allocation10 + $0x2a0] sm:$0xff]
    %v505 = vld [vmem:[#allocation10 + $0x2a8] sm:$0xf]
    %v506 = vld [vmem:[#allocation10 + $0x2ac] sm:$0xff]
    %v507 = vld [vmem:[#allocation10 + $0x2b4] sm:$0xf]
    %v508 = vld [vmem:[#allocation10 + $0x2b8] sm:$0xff]
    %v509 = vld [vmem:[#allocation10 + $0x2c0] sm:$0xf]
    %v510 = vld [vmem:[#allocation10 + $0x2c4] sm:$0xff]
    %v511 = vld [vmem:[#allocation10 + $0x2cc] sm:$0xf]
    %v512 = vld [vmem:[#allocation10 + $0x2d0] sm:$0xff]
    %v513 = vld [vmem:[#allocation10 + $0x2d8] sm:$0xf]
    %v514 = vld [vmem:[#allocation10 + $0x2dc] sm:$0xff]
    %v515 = vld [vmem:[#allocation10 + $0x2e4] sm:$0xf]
    %v516 = vld [vmem:[#allocation10 + $0x2e8] sm:$0xff]
    %v517 = vld [vmem:[#allocation10 + $0x2f0] sm:$0xf]
    %v518 = vld [vmem:[#allocation10 + $0x2f4] sm:$0xff]
    %v519 = vld [vmem:[#allocation10 + $0x2fc] sm:$0xf]
    %v520 = vld [vmem:[%s6] sm:$0x7]
    %v522 = vlaneseq
    %v523 = vshrl.u32 %v522, 7
    %v524 = vsub.s32 0, %v523
    %v525 = vrot.slane %v520, %v524
    %v526 = vlaneseq
    %v527 = vshrl.u32 %v526, 7
    %v528 = vsub.s32 1, %v527
    %v529 = vrot.slane %v520, %v528
    %v530 = vlaneseq
    %v531 = vshrl.u32 %v530, 7
    %v532 = vsub.s32 2, %v531
    %v533 = vrot.slane %v520, %v532
    %v665 = vunpack.c.l.b16 %v392
    %v666 = vunpack.c.h.b16 %v392
    %v667 = vunpack.c.l.b16 %v393
    %v668 = vunpack.c.l.b16 %v394
    %v669 = vunpack.c.h.b16 %v394
    %v670 = vunpack.c.l.b16 %v395
    %v671 = vunpack.c.l.b16 %v396
    %v672 = vunpack.c.h.b16 %v396
    %v673 = vunpack.c.l.b16 %v397
    %v674 = vunpack.c.l.b16 %v398
    %v675 = vunpack.c.h.b16 %v398
    %v676 = vunpack.c.l.b16 %v399
    %v677 = vunpack.c.l.b16 %v400
    %v678 = vunpack.c.h.b16 %v400
    %v679 = vunpack.c.l.b16 %v401
    %v680 = vunpack.c.l.b16 %v402
    %v681 = vunpack.c.h.b16 %v402
    %v682 = vunpack.c.l.b16 %v403
    %v683 = vunpack.c.l.b16 %v404
    %v684 = vunpack.c.h.b16 %v404
    %v685 = vunpack.c.l.b16 %v405
    %v686 = vunpack.c.l.b16 %v406
    %v687 = vunpack.c.h.b16 %v406
    %v688 = vunpack.c.l.b16 %v407
    %v689 = vunpack.c.l.b16 %v408
    %v690 = vunpack.c.h.b16 %v408
    %v691 = vunpack.c.l.b16 %v409
    %v692 = vunpack.c.l.b16 %v410
    %v693 = vunpack.c.h.b16 %v410
    %v694 = vunpack.c.l.b16 %v411
    %v695 = vunpack.c.l.b16 %v412
    %v696 = vunpack.c.h.b16 %v412
    %v697 = vunpack.c.l.b16 %v413
    %v698 = vunpack.c.l.b16 %v414
    %v699 = vunpack.c.h.b16 %v414
    %v700 = vunpack.c.l.b16 %v415
    %v701 = vunpack.c.l.b16 %v416
    %v702 = vunpack.c.h.b16 %v416
    %v703 = vunpack.c.l.b16 %v417
    %v704 = vunpack.c.l.b16 %v418
    %v705 = vunpack.c.h.b16 %v418
    %v706 = vunpack.c.l.b16 %v419
    %v707 = vunpack.c.l.b16 %v420
    %v708 = vunpack.c.h.b16 %v420
    %v709 = vunpack.c.l.b16 %v421
    %v710 = vunpack.c.l.b16 %v422
    %v711 = vunpack.c.h.b16 %v422
    %v712 = vunpack.c.l.b16 %v423
    %v713 = vunpack.c.l.b16 %v424
    %v714 = vunpack.c.h.b16 %v424
    %v715 = vunpack.c.l.b16 %v425
    %v716 = vunpack.c.l.b16 %v426
    %v717 = vunpack.c.h.b16 %v426
    %v718 = vunpack.c.l.b16 %v427
    %v719 = vunpack.c.l.b16 %v428
    %v720 = vunpack.c.h.b16 %v428
    %v721 = vunpack.c.l.b16 %v429
    %v722 = vunpack.c.l.b16 %v430
    %v723 = vunpack.c.h.b16 %v430
    %v724 = vunpack.c.l.b16 %v431
    %v725 = vunpack.c.l.b16 %v432
    %v726 = vunpack.c.h.b16 %v432
    %v727 = vunpack.c.l.b16 %v433
    %v728 = vunpack.c.l.b16 %v434
    %v729 = vunpack.c.h.b16 %v434
    %v730 = vunpack.c.l.b16 %v435
    %v731 = vunpack.c.l.b16 %v436
    %v732 = vunpack.c.h.b16 %v436
    %v733 = vunpack.c.l.b16 %v437
    %v734 = vunpack.c.l.b16 %v438
    %v735 = vunpack.c.h.b16 %v438
    %v736 = vunpack.c.l.b16 %v439
    %v737 = vunpack.c.l.b16 %v440
    %v738 = vunpack.c.h.b16 %v440
    %v739 = vunpack.c.l.b16 %v441
    %v740 = vunpack.c.l.b16 %v442
    %v741 = vunpack.c.h.b16 %v442
    %v742 = vunpack.c.l.b16 %v443
    %v743 = vunpack.c.l.b16 %v444
    %v744 = vunpack.c.h.b16 %v444
    %v745 = vunpack.c.l.b16 %v445
    %v746 = vunpack.c.l.b16 %v446
    %v747 = vunpack.c.h.b16 %v446
    %v748 = vunpack.c.l.b16 %v447
    %v749 = vunpack.c.l.b16 %v448
    %v750 = vunpack.c.h.b16 %v448
    %v751 = vunpack.c.l.b16 %v449
    %v752 = vunpack.c.l.b16 %v450
    %v753 = vunpack.c.h.b16 %v450
    %v754 = vunpack.c.l.b16 %v451
    %v755 = vunpack.c.l.b16 %v452
    %v756 = vunpack.c.h.b16 %v452
    %v757 = vunpack.c.l.b16 %v453
    %v758 = vunpack.c.l.b16 %v454
    %v759 = vunpack.c.h.b16 %v454
    %v760 = vunpack.c.l.b16 %v455
    %v761 = vunpack.c.l.b16 %v456
    %v762 = vunpack.c.h.b16 %v456
    %v763 = vunpack.c.l.b16 %v457
    %v764 = vunpack.c.l.b16 %v458
    %v765 = vunpack.c.h.b16 %v458
    %v766 = vunpack.c.l.b16 %v459
    %v767 = vunpack.c.l.b16 %v460
    %v768 = vunpack.c.h.b16 %v460
    %v769 = vunpack.c.l.b16 %v461
    %v770 = vunpack.c.l.b16 %v462
    %v771 = vunpack.c.h.b16 %v462
    %v772 = vunpack.c.l.b16 %v463
    %v773 = vunpack.c.l.b16 %v464
    %v774 = vunpack.c.h.b16 %v464
    %v775 = vunpack.c.l.b16 %v465
    %v776 = vunpack.c.l.b16 %v466
    %v777 = vunpack.c.h.b16 %v466
    %v778 = vunpack.c.l.b16 %v467
    %v779 = vunpack.c.l.b16 %v468
    %v780 = vunpack.c.h.b16 %v468
    %v781 = vunpack.c.l.b16 %v469
    %v782 = vunpack.c.l.b16 %v470
    %v783 = vunpack.c.h.b16 %v470
    %v784 = vunpack.c.l.b16 %v471
    %v785 = vunpack.c.l.b16 %v472
    %v786 = vunpack.c.h.b16 %v472
    %v787 = vunpack.c.l.b16 %v473
    %v788 = vunpack.c.l.b16 %v474
    %v789 = vunpack.c.h.b16 %v474
    %v790 = vunpack.c.l.b16 %v475
    %v791 = vunpack.c.l.b16 %v476
    %v792 = vunpack.c.h.b16 %v476
    %v793 = vunpack.c.l.b16 %v477
    %v794 = vunpack.c.l.b16 %v478
    %v795 = vunpack.c.h.b16 %v478
    %v796 = vunpack.c.l.b16 %v479
    %v797 = vunpack.c.l.b16 %v480
    %v798 = vunpack.c.h.b16 %v480
    %v799 = vunpack.c.l.b16 %v481
    %v800 = vunpack.c.l.b16 %v482
    %v801 = vunpack.c.h.b16 %v482
    %v802 = vunpack.c.l.b16 %v483
    %v803 = vunpack.c.l.b16 %v484
    %v804 = vunpack.c.h.b16 %v484
    %v805 = vunpack.c.l.b16 %v485
    %v806 = vunpack.c.l.b16 %v486
    %v807 = vunpack.c.h.b16 %v486
    %v808 = vunpack.c.l.b16 %v487
    %v809 = vunpack.c.l.b16 %v488
    %v810 = vunpack.c.h.b16 %v488
    %v811 = vunpack.c.l.b16 %v489
    %v812 = vunpack.c.l.b16 %v490
    %v813 = vunpack.c.h.b16 %v490
    %v814 = vunpack.c.l.b16 %v491
    %v815 = vunpack.c.l.b16 %v492
    %v816 = vunpack.c.h.b16 %v492
    %v817 = vunpack.c.l.b16 %v493
    %v818 = vunpack.c.l.b16 %v494
    %v819 = vunpack.c.h.b16 %v494
    %v820 = vunpack.c.l.b16 %v495
    %v821 = vunpack.c.l.b16 %v496
    %v822 = vunpack.c.h.b16 %v496
    %v823 = vunpack.c.l.b16 %v497
    %v824 = vunpack.c.l.b16 %v498
    %v825 = vunpack.c.h.b16 %v498
    %v826 = vunpack.c.l.b16 %v499
    %v827 = vunpack.c.l.b16 %v500
    %v828 = vunpack.c.h.b16 %v500
    %v829 = vunpack.c.l.b16 %v501
    %v830 = vunpack.c.l.b16 %v502
    %v831 = vunpack.c.h.b16 %v502
    %v832 = vunpack.c.l.b16 %v503
    %v833 = vunpack.c.l.b16 %v504
    %v834 = vunpack.c.h.b16 %v504
    %v835 = vunpack.c.l.b16 %v505
    %v836 = vunpack.c.l.b16 %v506
    %v837 = vunpack.c.h.b16 %v506
    %v838 = vunpack.c.l.b16 %v507
    %v839 = vunpack.c.l.b16 %v508
    %v840 = vunpack.c.h.b16 %v508
    %v841 = vunpack.c.l.b16 %v509
    %v842 = vunpack.c.l.b16 %v510
    %v843 = vunpack.c.h.b16 %v510
    %v844 = vunpack.c.l.b16 %v511
    %v845 = vunpack.c.l.b16 %v512
    %v846 = vunpack.c.h.b16 %v512
    %v847 = vunpack.c.l.b16 %v513
    %v848 = vunpack.c.l.b16 %v514
    %v849 = vunpack.c.h.b16 %v514
    %v850 = vunpack.c.l.b16 %v515
    %v851 = vunpack.c.l.b16 %v516
    %v852 = vunpack.c.h.b16 %v516
    %v853 = vunpack.c.l.b16 %v517
    %v854 = vunpack.c.l.b16 %v518
    %v855 = vunpack.c.h.b16 %v518
    %v856 = vunpack.c.l.b16 %v519
    %v857 = vpack.c.b16 %v668, %v665
    %v858 = vpack.c.b16 %v669, %v666
    %v859 = vpack.c.b16 %v670, %v667
    %v860 = vpack.c.b16 %v674, %v671
    %v861 = vpack.c.b16 %v675, %v672
    %v862 = vpack.c.b16 %v676, %v673
    %v863 = vpack.c.b16 %v680, %v677
    %v864 = vpack.c.b16 %v681, %v678
    %v865 = vpack.c.b16 %v682, %v679
    %v866 = vpack.c.b16 %v686, %v683
    %v867 = vpack.c.b16 %v687, %v684
    %v868 = vpack.c.b16 %v688, %v685
    %v869 = vpack.c.b16 %v692, %v689
    %v870 = vpack.c.b16 %v693, %v690
    %v871 = vpack.c.b16 %v694, %v691
    %v872 = vpack.c.b16 %v698, %v695
    %v873 = vpack.c.b16 %v699, %v696
    %v874 = vpack.c.b16 %v700, %v697
    %v875 = vpack.c.b16 %v704, %v701
    %v876 = vpack.c.b16 %v705, %v702
    %v877 = vpack.c.b16 %v706, %v703
    %v878 = vpack.c.b16 %v710, %v707
    %v879 = vpack.c.b16 %v711, %v708
    %v880 = vpack.c.b16 %v712, %v709
    %v881 = vpack.c.b16 %v716, %v713
    %v882 = vpack.c.b16 %v717, %v714
    %v883 = vpack.c.b16 %v718, %v715
    %v884 = vpack.c.b16 %v722, %v719
    %v885 = vpack.c.b16 %v723, %v720
    %v886 = vpack.c.b16 %v724, %v721
    %v887 = vpack.c.b16 %v728, %v725
    %v888 = vpack.c.b16 %v729, %v726
    %v889 = vpack.c.b16 %v730, %v727
    %v890 = vpack.c.b16 %v734, %v731
    %v891 = vpack.c.b16 %v735, %v732
    %v892 = vpack.c.b16 %v736, %v733
    %v893 = vpack.c.b16 %v740, %v737
    %v894 = vpack.c.b16 %v741, %v738
    %v895 = vpack.c.b16 %v742, %v739
    %v896 = vpack.c.b16 %v746, %v743
    %v897 = vpack.c.b16 %v747, %v744
    %v898 = vpack.c.b16 %v748, %v745
    %v899 = vpack.c.b16 %v752, %v749
    %v900 = vpack.c.b16 %v753, %v750
    %v901 = vpack.c.b16 %v754, %v751
    %v902 = vpack.c.b16 %v758, %v755
    %v903 = vpack.c.b16 %v759, %v756
    %v904 = vpack.c.b16 %v760, %v757
    %v905 = vpack.c.b16 %v764, %v761
    %v906 = vpack.c.b16 %v765, %v762
    %v907 = vpack.c.b16 %v766, %v763
    %v908 = vpack.c.b16 %v770, %v767
    %v909 = vpack.c.b16 %v771, %v768
    %v910 = vpack.c.b16 %v772, %v769
    %v911 = vpack.c.b16 %v776, %v773
    %v912 = vpack.c.b16 %v777, %v774
    %v913 = vpack.c.b16 %v778, %v775
    %v914 = vpack.c.b16 %v782, %v779
    %v915 = vpack.c.b16 %v783, %v780
    %v916 = vpack.c.b16 %v784, %v781
    %v917 = vpack.c.b16 %v788, %v785
    %v918 = vpack.c.b16 %v789, %v786
    %v919 = vpack.c.b16 %v790, %v787
    %v920 = vpack.c.b16 %v794, %v791
    %v921 = vpack.c.b16 %v795, %v792
    %v922 = vpack.c.b16 %v796, %v793
    %v923 = vpack.c.b16 %v800, %v797
    %v924 = vpack.c.b16 %v801, %v798
    %v925 = vpack.c.b16 %v802, %v799
    %v926 = vpack.c.b16 %v806, %v803
    %v927 = vpack.c.b16 %v807, %v804
    %v928 = vpack.c.b16 %v808, %v805
    %v929 = vpack.c.b16 %v812, %v809
    %v930 = vpack.c.b16 %v813, %v810
    %v931 = vpack.c.b16 %v814, %v811
    %v932 = vpack.c.b16 %v818, %v815
    %v933 = vpack.c.b16 %v819, %v816
    %v934 = vpack.c.b16 %v820, %v817
    %v935 = vpack.c.b16 %v824, %v821
    %v936 = vpack.c.b16 %v825, %v822
    %v937 = vpack.c.b16 %v826, %v823
    %v938 = vpack.c.b16 %v830, %v827
    %v939 = vpack.c.b16 %v831, %v828
    %v940 = vpack.c.b16 %v832, %v829
    %v941 = vpack.c.b16 %v836, %v833
    %v942 = vpack.c.b16 %v837, %v834
    %v943 = vpack.c.b16 %v838, %v835
    %v944 = vpack.c.b16 %v842, %v839
    %v945 = vpack.c.b16 %v843, %v840
    %v946 = vpack.c.b16 %v844, %v841
    %v947 = vpack.c.b16 %v848, %v845
    %v948 = vpack.c.b16 %v849, %v846
    %v949 = vpack.c.b16 %v850, %v847
    %v950 = vpack.c.b16 %v854, %v851
    %v951 = vpack.c.b16 %v855, %v852
    %v952 = vpack.c.b16 %v856, %v853
    %1049 = vmatprep.subr.bf16.mxu0 %v879
    %1050 = vmatpush1.bf16.msra.mxu0 %v878
    %1051 = vmatprep.subr.bf16.mxu0 %v876
    %1052 = vmatpush1.bf16.msra.mxu0 %v875
    %1053 = vmatprep.subr.bf16.mxu0 %v873
    %1054 = vmatpush1.bf16.msra.mxu0 %v872
    %1055 = vmatprep.subr.bf16.mxu0 %v870
    %1056 = vmatpush1.bf16.msra.mxu0 %v869
    %1057 = vmatprep.subr.bf16.mxu0 %v867
    %1058 = vmatpush1.bf16.msra.mxu0 %v866
    %1059 = vmatprep.subr.bf16.mxu0 %v864
    %1060 = vmatpush1.bf16.msra.mxu0 %v863
    %1061 = vmatprep.subr.bf16.mxu0 %v861
    %1062 = vmatpush1.bf16.msra.mxu0 %v860
    %1063 = vmatprep.subr.bf16.mxu0 %v858
    %1064 = vmatpush1.bf16.msra.mxu0 %v857
    %1065 = vmatprep.subr.bf16.mxu0 %v903
    %1066 = vmatpush2.bf16.msra.mxu0 %v902
    %1067 = vmatprep.subr.bf16.mxu0 %v900
    %1068 = vmatpush2.bf16.msra.mxu0 %v899
    %1069 = vmatprep.subr.bf16.mxu0 %v897
    %1070 = vmatpush2.bf16.msra.mxu0 %v896
    %1071 = vmatprep.subr.bf16.mxu0 %v894
    %1072 = vmatpush2.bf16.msra.mxu0 %v893
    %1073 = vmatprep.subr.bf16.mxu0 %v891
    %1074 = vmatpush2.bf16.msra.mxu0 %v890
    %1075 = vmatprep.subr.bf16.mxu0 %v888
    %1076 = vmatpush2.bf16.msra.mxu0 %v887
    %1077 = vmatprep.subr.bf16.mxu0 %v885
    %1078 = vmatpush2.bf16.msra.mxu0 %v884
    %1079 = vmatprep.subr.bf16.mxu0 %v882
    %1080 = vmatpush2.bf16.msra.mxu0 %v881
    %1081 = vmatprep.mubr.bf16.mxu0 %v389
    %1082 = vmatmul.mubr.bf16.gmra.mxu0 %v388
    %v1083 = vpop.f32.mrf.mxu0
    %v1084 = vadd.f32 %v525, %v1083
    %v1085 = vpop.f32.mrf.mxu0
    %v1086 = vadd.f32 %v529, %v1085
    %v1087 = vpop.f32.mrf.mxu0
    %v1088 = vpop.f32.mrf.mxu0
    %1089 = vdwg.mxu0
    %1090 = vmatprep.subr.bf16.mxu0 %v927
    %1091 = vmatpush1.bf16.msra.mxu0 %v926
    %1092 = vmatprep.subr.bf16.mxu0 %v924
    %1093 = vmatpush1.bf16.msra.mxu0 %v923
    %1094 = vmatprep.subr.bf16.mxu0 %v921
    %1095 = vmatpush1.bf16.msra.mxu0 %v920
    %1096 = vmatprep.subr.bf16.mxu0 %v918
    %1097 = vmatpush1.bf16.msra.mxu0 %v917
    %1098 = vmatprep.subr.bf16.mxu0 %v915
    %1099 = vmatpush1.bf16.msra.mxu0 %v914
    %1100 = vmatprep.subr.bf16.mxu0 %v912
    %1101 = vmatpush1.bf16.msra.mxu0 %v911
    %1102 = vmatprep.subr.bf16.mxu0 %v909
    %1103 = vmatpush1.bf16.msra.mxu0 %v908
    %1104 = vmatprep.subr.bf16.mxu0 %v906
    %1105 = vmatpush1.bf16.msra.mxu0 %v905
    %1106 = vmatprep.subr.bf16.mxu0 %v951
    %1107 = vmatpush2.bf16.msra.mxu0 %v950
    %1108 = vmatprep.subr.bf16.mxu0 %v948
    %1109 = vmatpush2.bf16.msra.mxu0 %v947
    %1110 = vmatprep.subr.bf16.mxu0 %v945
    %1111 = vmatpush2.bf16.msra.mxu0 %v944
    %1112 = vmatprep.subr.bf16.mxu0 %v942
    %1113 = vmatpush2.bf16.msra.mxu0 %v941
    %1114 = vmatprep.subr.bf16.mxu0 %v939
    %1115 = vmatpush2.bf16.msra.mxu0 %v938
    %1116 = vmatprep.subr.bf16.mxu0 %v936
    %1117 = vmatpush2.bf16.msra.mxu0 %v935
    %1118 = vmatprep.subr.bf16.mxu0 %v933
    %1119 = vmatpush2.bf16.msra.mxu0 %v932
    %1120 = vmatprep.subr.bf16.mxu0 %v930
    %1121 = vmatpush2.bf16.msra.mxu0 %v929
    %1122 = vmatprep.mubr.bf16.mxu0 %v391
    %1123 = vmatmul.mubr.bf16.gmra.mxu0 %v390
    %v1124 = vpop.f32.mrf.mxu0
    %v1125 = vadd.f32 %v1084, %v1124
    %v1126 = vpop.f32.mrf.mxu0
    %v1127 = vadd.f32 %v1086, %v1126
    %v1128 = vpop.f32.mrf.mxu0
    %v1129 = vpop.f32.mrf.mxu0
    %1130 = vdwg.mxu0
    %1131 = vmatprep.subr.bf16.mxu0 0
    %1132 = vmatpush1.bf16.msra.mxu0 %v880
    %1133 = vmatprep.subr.bf16.mxu0 0
    %1134 = vmatpush1.bf16.msra.mxu0 %v877
    %1135 = vmatprep.subr.bf16.mxu0 0
    %1136 = vmatpush1.bf16.msra.mxu0 %v874
    %1137 = vmatprep.subr.bf16.mxu0 0
    %1138 = vmatpush1.bf16.msra.mxu0 %v871
    %1139 = vmatprep.subr.bf16.mxu0 0
    %1140 = vmatpush1.bf16.msra.mxu0 %v868
    %1141 = vmatprep.subr.bf16.mxu0 0
    %1142 = vmatpush1.bf16.msra.mxu0 %v865
    %1143 = vmatprep.subr.bf16.mxu0 0
    %1144 = vmatpush1.bf16.msra.mxu0 %v862
    %1145 = vmatprep.subr.bf16.mxu0 0
    %1146 = vmatpush1.bf16.msra.mxu0 %v859
    %1147 = vmatprep.subr.bf16.mxu0 0
    %1148 = vmatpush2.bf16.msra.mxu0 %v904
    %1149 = vmatprep.subr.bf16.mxu0 0
    %1150 = vmatpush2.bf16.msra.mxu0 %v901
    %1151 = vmatprep.subr.bf16.mxu0 0
    %1152 = vmatpush2.bf16.msra.mxu0 %v898
    %1153 = vmatprep.subr.bf16.mxu0 0
    %1154 = vmatpush2.bf16.msra.mxu0 %v895
    %1155 = vmatprep.subr.bf16.mxu0 0
    %1156 = vmatpush2.bf16.msra.mxu0 %v892
    %1157 = vmatprep.subr.bf16.mxu0 0
    %1158 = vmatpush2.bf16.msra.mxu0 %v889
    %1159 = vmatprep.subr.bf16.mxu0 0
    %1160 = vmatpush2.bf16.msra.mxu0 %v886
    %1161 = vmatprep.subr.bf16.mxu0 0
    %1162 = vmatpush2.bf16.msra.mxu0 %v883
    %1163 = vmatprep.mubr.bf16.mxu0 %v389
    %1164 = vmatmul.mubr.bf16.gmra.mxu0 %v388
    %v1165 = vpop.f32.mrf.mxu0
    %v1166 = vadd.f32 %v533, %v1165
    %v1167 = vpop.f32.mrf.mxu0
    %v1168 = vpop.f32.mrf.mxu0
    %v1169 = vpop.f32.mrf.mxu0
    %1170 = vdwg.mxu0
    %1171 = vmatprep.subr.bf16.mxu0 0
    %1172 = vmatpush1.bf16.msra.mxu0 %v928
    %1173 = vmatprep.subr.bf16.mxu0 0
    %1174 = vmatpush1.bf16.msra.mxu0 %v925
    %1175 = vmatprep.subr.bf16.mxu0 0
    %1176 = vmatpush1.bf16.msra.mxu0 %v922
    %1177 = vmatprep.subr.bf16.mxu0 0
    %1178 = vmatpush1.bf16.msra.mxu0 %v919
    %1179 = vmatprep.subr.bf16.mxu0 0
    %1180 = vmatpush1.bf16.msra.mxu0 %v916
    %1181 = vmatprep.subr.bf16.mxu0 0
    %1182 = vmatpush1.bf16.msra.mxu0 %v913
    %1183 = vmatprep.subr.bf16.mxu0 0
    %1184 = vmatpush1.bf16.msra.mxu0 %v910
    %1185 = vmatprep.subr.bf16.mxu0 0
    %1186 = vmatpush1.bf16.msra.mxu0 %v907
    %1187 = vmatprep.subr.bf16.mxu0 0
    %1188 = vmatpush2.bf16.msra.mxu0 %v952
    %1189 = vmatprep.subr.bf16.mxu0 0
    %1190 = vmatpush2.bf16.msra.mxu0 %v949
    %1191 = vmatprep.subr.bf16.mxu0 0
    %1192 = vmatpush2.bf16.msra.mxu0 %v946
    %1193 = vmatprep.subr.bf16.mxu0 0
    %1194 = vmatpush2.bf16.msra.mxu0 %v943
    %1195 = vmatprep.subr.bf16.mxu0 0
    %1196 = vmatpush2.bf16.msra.mxu0 %v940
    %1197 = vmatprep.subr.bf16.mxu0 0
    %1198 = vmatpush2.bf16.msra.mxu0 %v937
    %1199 = vmatprep.subr.bf16.mxu0 0
    %1200 = vmatpush2.bf16.msra.mxu0 %v934
    %1201 = vmatprep.subr.bf16.mxu0 0
    %1202 = vmatpush2.bf16.msra.mxu0 %v931
    %1203 = vmatprep.mubr.bf16.mxu0 %v391
    %1204 = vmatmul.mubr.bf16.gmra.mxu0 %v390
    %v1205 = vpop.f32.mrf.mxu0
    %v1206 = vadd.f32 %v1166, %v1205
    %v1207 = vpop.f32.mrf.mxu0
    %v1208 = vpop.f32.mrf.mxu0
    %v1209 = vpop.f32.mrf.mxu0
    %1210 = vdwg.mxu0
    %v1211 = vmax.f32 %v1125, 0.0
    %v1212 = vmax.f32 %v1127, 0.0
    %v1213 = vmax.f32 %v1206, 0.0
    %v1214 = vld [vmem:[%s7] sm:$0x7]
    %v1215 = vunpack.c.l.bf16 %v1214
    %v1217 = vlaneseq
    %v1218 = vshrl.u32 %v1217, 7
    %v1219 = vsub.s32 0, %v1218
    %v1220 = vrot.slane %v1215, %v1219
    %v1221 = vlaneseq
    %v1222 = vshrl.u32 %v1221, 7
    %v1223 = vsub.s32 2, %v1222
    %v1224 = vrot.slane %v1215, %v1223
    %v1225 = vlaneseq
    %v1226 = vshrl.u32 %v1225, 7
    %v1227 = vsub.s32 4, %v1226
    %v1228 = vrot.slane %v1215, %v1227
    %v1232 = vlaneseq
    %v1233 = vshrl.u32 %v1232, 7
    %v1234 = vsub.s32 0, %v1233
    %v1235 = vrot.slane %v1220, %v1234
    %v1236 = vlaneseq
    %v1237 = vshrl.u32 %v1236, 7
    %v1238 = vsub.s32 0, %v1237
    %v1239 = vrot.slane %v1224, %v1238
    %v1240 = vlaneseq
    %v1241 = vshrl.u32 %v1240, 7
    %v1242 = vsub.s32 0, %v1241
    %v1243 = vrot.slane %v1228, %v1242
    %v1244 = vmul.f32 %v1211, %v1235
    %v1245 = vmul.f32 %v1212, %v1239
    %v1246 = vmul.f32 %v1213, %v1243
    %v1247 = vadd.f32 %v1244, %v1245
    %v1248 = vadd.f32 %v1247, %v1246
    %1249 = vadd.xlane.f32.xlu0 %v1248
    %v1250 = vpop.xlane.xlu0 %1249
    %v1251 = vld [vmem:[#allocation2] sm:$0x1]
    %v1253 = vlaneseq
    %v1254 = vshrl.u32 %v1253, 7
    %v1255 = vsub.s32 0, %v1254
    %v1256 = vrot.slane %v1251, %v1255
    %v1258 = vadd.f32 %v1250, %v1256
    %vm1259 = vcmask 7168
    %1260 = vst.msk [vmem:[%s9] sm:$0xff] %vm1259, %v1258
    // Predicated region
    $region58: #{critic_forward.1} parent=1 // pred_check
      _
    $region59: #{critic_forward.1} parent=1 // pred_check_branch
      %1262 = sbr.rel (0) target = $region61
    $region60: #{critic_forward.1} parent=1 // pred_region
      _
    $region61: #{critic_forward.1} parent=1 // pred_fallthru
      _
    // Predicated region
    $region62: #{critic_forward.1} parent=1 // pred_check
      _
    $region63: #{critic_forward.1} parent=1 // pred_check_branch
      %1264 = sbr.rel (0) target = $region65
    $region64: #{critic_forward.1} parent=1 // pred_region
      _
    $region65: #{critic_forward.1} parent=1 // pred_fallthru
      _
    %1265 = vsyncpa [#allocation4], 1
    %1266 = vsyncpa [#allocation6], 1
    %1267 = vsyncpa [#allocation9], 1

</llo_original>
